<compile_context>
chip_gen: v5e
topology: v5e:2x2
jax: 0.10.0
libtpu: 0.0.40
codegen_flags: <defaults>
</compile_context>

<pallas_src>
import functools
import math
from typing import NamedTuple, Optional

import jax
import jax.numpy as jnp
from jax.experimental import pallas as pl
from jax.experimental.pallas import tpu as pltpu

_SQRT_HALF = 0.7071067811865476
# Abramowitz & Stegun 7.1.25 (3-term) erf polynomial, |abs err| <= 2.5e-5.
_ERF_P = 0.47047
_ERF_A1 = 0.3480242
_ERF_A2 = -0.0958798
_ERF_A3 = 0.7478556


def _round_up(v, m):
    return ((v + m - 1) // m) * m


# ----------------------------- in-kernel math ------------------------------


def _erf_poly(z, *, approx_recip):
    # Only exp / mul / add / reciprocal / select -> guaranteed Mosaic lowering.
    za = jnp.abs(z)
    t = pl.reciprocal(1.0 + _ERF_P * za, approx=approx_recip)  # EUP slot
    poly = ((_ERF_A3 * t + _ERF_A2) * t + _ERF_A1) * t
    e = 1.0 - poly * jnp.exp(-(za * za))
    return jnp.where(z >= 0.0, e, -e)


def _gelu(x, *, approx_recip):
    # Exact-erf-form GELU (matches nn.GELU() default), polynomial erf.
    return 0.5 * x * (1.0 + _erf_poly(x * _SQRT_HALF, approx_recip=approx_recip))


def _mlp_kernel_resident(x_ref, w1_ref, b1_ref, w2_ref, b2_ref, o_ref, *, approx_recip):
    # x_ref: (tm, D_in) in the caller's dtype; cast in-kernel (VPU, hidden under MXU).
    xw = x_ref[...].astype(w1_ref.dtype)
    h = jnp.dot(xw, w1_ref[...], preferred_element_type=jnp.float32)
    h = _gelu(h + b1_ref[...], approx_recip=approx_recip)        # bias + GELU in f32
    h = h.astype(w2_ref.dtype)                                   # bf16 fast path
    out = jnp.dot(h, w2_ref[...], preferred_element_type=jnp.float32)
    o_ref[...] = (out + b2_ref[...]).astype(o_ref.dtype)


def _mlp_kernel_hidden_tiled(x_ref, w1_ref, b1_ref, w2_ref, b2_ref, o_ref, acc_ref,
                             *, approx_recip):
    # Grid axis 1 tiles the hidden dimension; fc2 partial sums accumulate in f32.
    k = pl.program_id(1)

    @pl.when(k == 0)
    def _():
        acc_ref[...] = jnp.zeros_like(acc_ref)

    xw = x_ref[...].astype(w1_ref.dtype)
    h = jnp.dot(xw, w1_ref[...], preferred_element_type=jnp.float32)
    h = _gelu(h + b1_ref[...], approx_recip=approx_recip)
    acc_ref[...] += jnp.dot(h.astype(w2_ref.dtype), w2_ref[...],
                            preferred_element_type=jnp.float32)

    @pl.when(k == pl.num_programs(1) - 1)
    def _():
        o_ref[...] = (acc_ref[...] + b2_ref[...]).astype(o_ref.dtype)


# ------------------------------ host helpers -------------------------------


class MlpParams(NamedTuple):
    w1t: jax.Array  # (D_in, D_h_pad)  compute dtype
    b1: jax.Array   # (1, D_h_pad)     f32
    w2t: jax.Array  # (D_h_pad, D_out) compute dtype
    b2: jax.Array   # (1, D_out)       f32


def prepare_mlp_params(w1, b1, w2, b2, *, compute_dtype=jnp.bfloat16):
    """One-time (hoisted) weight prep: transpose + cast + lane-pad hidden dim.

    w1: (D_h, D_in) fc1.weight (PyTorch layout), b1: (D_h,)
    w2: (D_out, D_h) fc2.weight (PyTorch layout), b2: (D_out,)
    """
    d_h, d_in = w1.shape
    d_out, d_h2 = w2.shape
    assert d_h2 == d_h, "fc2 weight does not match hidden features"
    cdtype = jnp.dtype(compute_dtype)

    w1t = jnp.asarray(w1).T.astype(cdtype)                  # (D_in, D_h)
    w2t = jnp.asarray(w2).T.astype(cdtype)                  # (D_h, D_out)
    b1r = jnp.asarray(b1).reshape(1, d_h).astype(jnp.float32)
    b2r = jnp.asarray(b2).reshape(1, d_out).astype(jnp.float32)

    d_h_p = _round_up(d_h, 128)                             # lane alignment; exact (GELU(0)=0, w2 pad rows=0)
    if d_h_p != d_h:
        w1t = jnp.pad(w1t, ((0, 0), (0, d_h_p - d_h)))
        w2t = jnp.pad(w2t, ((0, d_h_p - d_h), (0, 0)))
        b1r = jnp.pad(b1r, ((0, 0), (0, d_h_p - d_h)))
    return MlpParams(w1t=w1t, b1=b1r, w2t=w2t, b2=b2r)


def _physical_vmem_bytes():
    try:
        info = pltpu.get_tpu_info()
        v = int(getattr(info, "vmem_capacity_bytes", 0))
        if v > 0:
            return v
    except Exception:
        pass
    return 64 * 1024 * 1024  # conservative (v7x per-TC)


def _choose_tm(m, tm_req, compute_itemsize):
    sub = 8 if compute_itemsize >= 4 else (16 if compute_itemsize == 2 else 32)
    if m <= tm_req:
        return _round_up(m, sub)
    return max(sub, (tm_req // sub) * sub)


def _resident_vmem_bytes(tm, d_in, d_h, d_out, wsize, xsize, osize, nbuf_w):
    w = nbuf_w * (d_in * d_h + d_h * d_out) * wsize
    b = nbuf_w * 8 * (_round_up(d_h, 128) + _round_up(d_out, 128)) * 4
    xio = 2 * tm * (d_in * xsize + d_out * osize)            # double-buffered x/out tiles
    hid = tm * d_h * (4 + wsize)                              # f32 hidden + cast copy
    return w + b + xio + hid + (2 << 20)


def _ktiled_vmem_bytes(tm, tk, d_in, d_out, wsize, xsize, osize):
    w = 2 * (d_in * tk + tk * d_out) * wsize
    b = 2 * 8 * (_round_up(tk, 128) + _round_up(d_out, 128)) * 4
    xio = 2 * tm * (d_in * xsize + d_out * osize)
    acc = tm * d_out * 4
    hid = tm * tk * (4 + wsize)
    return w + b + xio + acc + hid + (2 << 20)


def _choose_hidden_block(d_h, tm, d_in, d_out, wsize, xsize, osize, cap):
    q = d_h // 128
    best = 128
    for div in range(1, q + 1):
        if q % div:
            continue
        tk = 128 * div
        if _ktiled_vmem_bytes(tm, tk, d_in, d_out, wsize, xsize, osize) <= cap:
            best = max(best, tk)
    return best


def _const_spec(shape, ngrid, single_buffer):
    index_map = (lambda i: (0, 0)) if ngrid == 1 else (lambda i, k: (0, 0))
    if single_buffer:
        try:
            return pl.BlockSpec(shape, index_map, pipeline_mode=pl.Buffered(1))
        except TypeError:
            pass
    return pl.BlockSpec(shape, index_map)


# --------------------------------- forward ---------------------------------


def mlp_forward(x, params: MlpParams, *, tm: int = 256,
                hidden_block: Optional[int] = None, out_dtype=None):
    """Fused Mlp forward. x: (..., D_in) -> (..., D_out). Dropout p=0 is identity."""
    d_in, d_h = params.w1t.shape
    d_h2, d_out = params.w2t.shape
    assert d_h2 == d_h
    *lead, d_in_x = x.shape
    assert d_in_x == d_in, "input features do not match fc1 weight"

    m = math.prod(lead) if lead else 1
    out_dtype = jnp.dtype(out_dtype) if out_dtype is not None else x.dtype
    wdtype = params.w1t.dtype
    wsize = jnp.dtype(wdtype).itemsize
    xsize = jnp.dtype(x.dtype).itemsize
    osize = jnp.dtype(out_dtype).itemsize
    approx_recip = wsize < 4  # EUP-approx reciprocal only on the bf16/fp8 path

    x2 = x.reshape(m, d_in)   # metadata-only for contiguous x; no wrapper-side cast

    cap = int(_physical_vmem_bytes() * 0.85)
    tm = _choose_tm(m, tm, wsize)

    cost = pl.CostEstimate(
        flops=int(2 * m * (d_in * d_h + d_h * d_out)),
        transcendentals=int(m * d_h),
        bytes_accessed=int(m * d_in * xsize + (d_in * d_h + d_h * d_out) * wsize
                           + (d_h + d_out) * 4 + m * d_out * osize),
    )

    use_resident = hidden_block is None
    nbuf_w = 2
    if use_resident:
        # single-buffer resident weights only when they are big enough to matter
        nbuf_w = 1 if (d_in * d_h + d_h * d_out) * wsize > (8 << 20) else 2
        need = _resident_vmem_bytes(tm, d_in, d_h, d_out, wsize, xsize, osize, nbuf_w)
        if need > cap:
            use_resident = False
        elif m >= 2 * tm:
            # cheap tm bump on parts with VMEM headroom (v5e/v6e 128 MiB)
            need2 = _resident_vmem_bytes(2 * tm, d_in, d_h, d_out, wsize, xsize, osize, nbuf_w)
            if need2 <= cap:
                tm, need = 2 * tm, need2

    if use_resident:
        grid = (pl.cdiv(m, tm),)
        kern = functools.partial(_mlp_kernel_resident, approx_recip=approx_recip)
        in_specs = [
            pl.BlockSpec((tm, d_in), lambda i: (i, 0)),
            _const_spec((d_in, d_h), 1, nbuf_w == 1),
            _const_spec((1, d_h), 1, nbuf_w == 1),
            _const_spec((d_h, d_out), 1, nbuf_w == 1),
            _const_spec((1, d_out), 1, nbuf_w == 1),
        ]
        out_specs = pl.BlockSpec((tm, d_out), lambda i: (i, 0))
        scratch_shapes = []
        dims = ("parallel",)
    else:
        tk = hidden_block if hidden_block is not None else _choose_hidden_block(
            d_h, tm, d_in, d_out, wsize, xsize, osize, cap)
        assert tk % 128 == 0 and d_h % tk == 0, "hidden_block must be a /128 divisor of padded d_h"
        need = _ktiled_vmem_bytes(tm, tk, d_in, d_out, wsize, xsize, osize)
        grid = (pl.cdiv(m, tm), d_h // tk)
        kern = functools.partial(_mlp_kernel_hidden_tiled, approx_recip=approx_recip)
        in_specs = [
            pl.BlockSpec((tm, d_in), lambda i, k: (i, 0)),
            pl.BlockSpec((d_in, tk), lambda i, k: (0, k)),
            pl.BlockSpec((1, tk), lambda i, k: (0, k)),
            pl.BlockSpec((tk, d_out), lambda i, k: (k, 0)),
            pl.BlockSpec((1, d_out), lambda i, k: (0, 0)),
        ]
        out_specs = pl.BlockSpec((tm, d_out), lambda i, k: (i, 0))
        scratch_shapes = [pltpu.VMEM((tm, d_out), jnp.float32)]
        dims = ("parallel", "arbitrary")

    # Derived VMEM limit: what we need (+30%) with a sane floor, capped below physical.
    limit = int(min(cap, max(need * 1.3, 32 << 20)))
    limit = max(limit, int(need))

    out = pl.pallas_call(
        kern,
        out_shape=jax.ShapeDtypeStruct((m, d_out), out_dtype),
        grid_spec=pltpu.PrefetchScalarGridSpec(
            num_scalar_prefetch=0,
            grid=grid,
            in_specs=in_specs,
            out_specs=out_specs,
            scratch_shapes=scratch_shapes,
        ),
        compiler_params=pltpu.CompilerParams(
            dimension_semantics=dims,
            vmem_limit_bytes=limit,
        ),
        cost_estimate=cost,
    )(x2, params.w1t, params.b1, params.w2t, params.b2)

    return out.reshape(*lead, d_out)


def mlp_forward_from_torch_layout(x, w1, b1, w2, b2, *, compute_dtype=jnp.bfloat16, **kw):
    """Convenience wrapper; for step loops call prepare_mlp_params once instead."""
    return mlp_forward(x, prepare_mlp_params(w1, b1, w2, b2, compute_dtype=compute_dtype), **kw)


# -------------------------------- reference --------------------------------


def _reference(x, w1, b1, w2, b2):
    """Pure-JAX f32 reference mirroring the PyTorch Mlp (dropout p=0)."""
    xf = x.astype(jnp.float32)
    h = xf @ w1.astype(jnp.float32).T + b1.astype(jnp.float32)
    h = jax.nn.gelu(h, approximate=False)    # exact erf GELU, as nn.GELU()
    return h @ w2.astype(jnp.float32).T + b2.astype(jnp.float32)


if __name__ == "__main__":
    key = jax.random.PRNGKey(0)
    ks = jax.random.split(key, 10)

    # Swin-like small shapes: tokens (B, L), in_features=32, hidden=4x=128.
    B, L, D_IN, D_H = 2, 64, 32, 128
    D_OUT = D_IN
    x = jax.random.normal(ks[0], (B, L, D_IN), dtype=jnp.float32)
    w1 = jax.random.normal(ks[1], (D_H, D_IN), dtype=jnp.float32) * (1.0 / math.sqrt(D_IN))
    b1 = jax.random.normal(ks[2], (D_H,), dtype=jnp.float32) * 0.02
    w2 = jax.random.normal(ks[3], (D_OUT, D_H), dtype=jnp.float32) * (1.0 / math.sqrt(D_H))
    b2 = jax.random.normal(ks[4], (D_OUT,), dtype=jnp.float32) * 0.02
    ref = _reference(x, w1, b1, w2, b2)

    # 1) f32 compute path (tight tolerance), resident weights.
    p32 = prepare_mlp_params(w1, b1, w2, b2, compute_dtype=jnp.float32)
    o32 = mlp_forward(x, p32)
    jax.block_until_ready(o32)
    assert o32.shape == (B, L, D_OUT), o32.shape
    err32 = float(jnp.max(jnp.abs(o32.astype(jnp.float32) - ref)))
    assert err32 < 2e-3, f"f32 path max err {err32}"

    # 2) default bf16 MXU path (f32 accumulation), resident weights.
    pbf = prepare_mlp_params(w1, b1, w2, b2)   # bfloat16 by default
    obf = mlp_forward(x, pbf)
    jax.block_until_ready(obf)
    errbf = float(jnp.max(jnp.abs(obf.astype(jnp.float32) - ref)))
    assert errbf < 5e-2, f"bf16 path max err {errbf}"

    # 3) hidden-dim-tiled fallback (v7x VMEM-pressure path), forced tk=128, f32 compute.
    D_IN2, D_H2 = 64, 256
    x2 = jax.random.normal(ks[5], (B, L, D_IN2), dtype=jnp.float32)
    w1b = jax.random.normal(ks[6], (D_H2, D_IN2), dtype=jnp.float32) * (1.0 / math.sqrt(D_IN2))
    b1b = jax.random.normal(ks[7], (D_H2,), dtype=jnp.float32) * 0.02
    w2b = jax.random.normal(ks[8], (D_IN2, D_H2), dtype=jnp.float32) * (1.0 / math.sqrt(D_H2))
    b2b = jax.random.normal(ks[9], (D_IN2,), dtype=jnp.float32) * 0.02
    ref2 = _reference(x2, w1b, b1b, w2b, b2b)
    pkt = prepare_mlp_params(w1b, b1b, w2b, b2b, compute_dtype=jnp.float32)
    okt = mlp_forward(x2, pkt, hidden_block=128)
    jax.block_until_ready(okt)
    errkt = float(jnp.max(jnp.abs(okt.astype(jnp.float32) - ref2)))
    assert errkt < 2e-3, f"hidden-tiled path max err {errkt}"

    # TODO(synk): training-mode nn.Dropout (p>0) not implemented (would use
    # pltpu.prng_seed / prng_random_bits); p=0.0 / eval mode is the identity.
    print("KERNEL_OK")
</pallas_src>

<mosaic_0001>
module attributes {stable_mosaic.version = 11 : i64} {
  func.func @_mlp_kernel_resident(%arg0: i32, %arg1: memref<128x32xf32, #tpu.memory_space<vmem>>, %arg2: memref<32x128xf32, #tpu.memory_space<vmem>>, %arg3: memref<1x128xf32, #tpu.memory_space<vmem>>, %arg4: memref<128x32xf32, #tpu.memory_space<vmem>>, %arg5: memref<1x32xf32, #tpu.memory_space<vmem>>, %arg6: memref<128x32xf32, #tpu.memory_space<vmem>>) attributes {dimension_semantics = [#tpu.dimension_semantics<parallel>], iteration_bounds = array<i64: 1>, scalar_prefetch = 0 : i64, scratch_operands = 0 : i64, tpu.core_type = #tpu.core_type<tc>, window_params = [{transform_indices = @transform_0, window_bounds = array<i64: 128, 32>}, {pipeline_mode = #tpu.pipeline_mode<synchronous>, transform_indices = @transform_1, window_bounds = array<i64: 32, 128>}, {pipeline_mode = #tpu.pipeline_mode<synchronous>, transform_indices = @transform_2, window_bounds = array<i64: 1, 128>}, {pipeline_mode = #tpu.pipeline_mode<synchronous>, transform_indices = @transform_3, window_bounds = array<i64: 128, 32>}, {pipeline_mode = #tpu.pipeline_mode<synchronous>, transform_indices = @transform_4, window_bounds = array<i64: 1, 32>}, {transform_indices = @transform_5, window_bounds = array<i64: 128, 32>}]} {
    %c0 = arith.constant 0 : index
    %c0_0 = arith.constant 0 : index
    %0 = vector.load %arg1[%c0, %c0_0] : memref<128x32xf32, #tpu.memory_space<vmem>>, vector<128x32xf32>
    %c0_1 = arith.constant 0 : index
    %c0_2 = arith.constant 0 : index
    %1 = vector.load %arg2[%c0_1, %c0_2] : memref<32x128xf32, #tpu.memory_space<vmem>>, vector<32x128xf32>
    %cst = arith.constant dense<0.000000e+00> : vector<128x128xf32>
    %2 = tpu.matmul %0, %1, %cst {dimension_numbers = #tpu.dot_dimension_numbers<[1], [0], [0], [1], [0, 0, 1, 1], [], []>} : vector<128x32xf32>, vector<32x128xf32>, vector<128x128xf32> -> vector<128x128xf32>
    %c0_3 = arith.constant 0 : index
    %c0_4 = arith.constant 0 : index
    %3 = vector.load %arg3[%c0_3, %c0_4] : memref<1x128xf32, #tpu.memory_space<vmem>>, vector<1x128xf32>
    %4 = vector.broadcast %3 : vector<1x128xf32> to vector<128x128xf32>
    %5 = arith.addf %2, %4 : vector<128x128xf32>
    %cst_5 = arith.constant 5.000000e-01 : f32
    %6 = vector.broadcast %cst_5 : f32 to vector<128x128xf32>
    %7 = arith.mulf %6, %5 : vector<128x128xf32>
    %cst_6 = arith.constant 0.707106769 : f32
    %8 = vector.broadcast %cst_6 : f32 to vector<128x128xf32>
    %9 = arith.mulf %5, %8 : vector<128x128xf32>
    %10 = math.absf %9 : vector<128x128xf32>
    %cst_7 = arith.constant 4.704700e-01 : f32
    %11 = vector.broadcast %cst_7 : f32 to vector<128x128xf32>
    %12 = arith.mulf %11, %10 : vector<128x128xf32>
    %cst_8 = arith.constant 1.000000e+00 : f32
    %13 = vector.broadcast %cst_8 : f32 to vector<128x128xf32>
    %14 = arith.addf %13, %12 : vector<128x128xf32>
    %15 = tpu.reciprocal %14 : vector<128x128xf32> -> vector<128x128xf32>
    %cst_9 = arith.constant 0.747855603 : f32
    %16 = vector.broadcast %cst_9 : f32 to vector<128x128xf32>
    %17 = arith.mulf %16, %15 : vector<128x128xf32>
    %cst_10 = arith.constant -9.587980e-02 : f32
    %18 = vector.broadcast %cst_10 : f32 to vector<128x128xf32>
    %19 = arith.addf %17, %18 : vector<128x128xf32>
    %20 = arith.mulf %19, %15 : vector<128x128xf32>
    %cst_11 = arith.constant 0.348024189 : f32
    %21 = vector.broadcast %cst_11 : f32 to vector<128x128xf32>
    %22 = arith.addf %20, %21 : vector<128x128xf32>
    %23 = arith.mulf %22, %15 : vector<128x128xf32>
    %24 = arith.mulf %10, %10 : vector<128x128xf32>
    %cst_12 = arith.constant 0.000000e+00 : f32
    %25 = vector.broadcast %cst_12 : f32 to vector<128x128xf32>
    %26 = arith.subf %25, %24 : vector<128x128xf32>
    %27 = math.exp %26 : vector<128x128xf32>
    %28 = arith.mulf %23, %27 : vector<128x128xf32>
    %cst_13 = arith.constant 1.000000e+00 : f32
    %29 = vector.broadcast %cst_13 : f32 to vector<128x128xf32>
    %30 = arith.subf %29, %28 : vector<128x128xf32>
    %cst_14 = arith.constant 0.000000e+00 : f32
    %31 = vector.broadcast %cst_14 : f32 to vector<128x128xf32>
    %32 = arith.cmpf oge, %9, %31 : vector<128x128xf32>
    %cst_15 = arith.constant 0.000000e+00 : f32
    %33 = vector.broadcast %cst_15 : f32 to vector<128x128xf32>
    %34 = arith.subf %33, %30 : vector<128x128xf32>
    %35 = arith.select %32, %30, %34 : vector<128x128xi1>, vector<128x128xf32>
    %cst_16 = arith.constant 1.000000e+00 : f32
    %36 = vector.broadcast %cst_16 : f32 to vector<128x128xf32>
    %37 = arith.addf %36, %35 : vector<128x128xf32>
    %38 = arith.mulf %7, %37 : vector<128x128xf32>
    %c0_17 = arith.constant 0 : index
    %c0_18 = arith.constant 0 : index
    %39 = vector.load %arg4[%c0_17, %c0_18] : memref<128x32xf32, #tpu.memory_space<vmem>>, vector<128x32xf32>
    %cst_19 = arith.constant dense<0.000000e+00> : vector<128x32xf32>
    %40 = tpu.matmul %38, %39, %cst_19 {dimension_numbers = #tpu.dot_dimension_numbers<[1], [0], [0], [1], [0, 0, 1, 1], [], []>} : vector<128x128xf32>, vector<128x32xf32>, vector<128x32xf32> -> vector<128x32xf32>
    %c0_20 = arith.constant 0 : index
    %c0_21 = arith.constant 0 : index
    %41 = vector.load %arg5[%c0_20, %c0_21] : memref<1x32xf32, #tpu.memory_space<vmem>>, vector<1x32xf32>
    %42 = vector.broadcast %41 : vector<1x32xf32> to vector<128x32xf32>
    %43 = arith.addf %40, %42 : vector<128x32xf32>
    %c0_22 = arith.constant 0 : index
    %c0_23 = arith.constant 0 : index
    %44 = vector.load %arg6[%c0_22, %c0_23] : memref<128x32xf32, #tpu.memory_space<vmem>>, vector<128x32xf32>
    tpu.vector_store %arg6[%c0_22, %c0_23], %43 {strides = array<i32>} : memref<128x32xf32, #tpu.memory_space<vmem>>, vector<128x32xf32>,
    return
  }
  func.func @transform_0(%arg0: i32) -> (i32, i32) {
    %c0_i32 = arith.constant 0 : i32
    %c0_i32_0 = arith.constant 0 : i32
    return %arg0, %c0_i32 : i32, i32
  }
  func.func @transform_1(%arg0: i32) -> (i32, i32) {
    %c0_i32 = arith.constant 0 : i32
    %c0_i32_0 = arith.constant 0 : i32
    %c0_i32_1 = arith.constant 0 : i32
    return %c0_i32, %c0_i32_0 : i32, i32
  }
  func.func @transform_2(%arg0: i32) -> (i32, i32) {
    %c0_i32 = arith.constant 0 : i32
    %c0_i32_0 = arith.constant 0 : i32
    %c0_i32_1 = arith.constant 0 : i32
    return %c0_i32, %c0_i32_0 : i32, i32
  }
  func.func @transform_3(%arg0: i32) -> (i32, i32) {
    %c0_i32 = arith.constant 0 : i32
    %c0_i32_0 = arith.constant 0 : i32
    %c0_i32_1 = arith.constant 0 : i32
    return %c0_i32, %c0_i32_0 : i32, i32
  }
  func.func @transform_4(%arg0: i32) -> (i32, i32) {
    %c0_i32 = arith.constant 0 : i32
    %c0_i32_0 = arith.constant 0 : i32
    %c0_i32_1 = arith.constant 0 : i32
    return %c0_i32, %c0_i32_0 : i32, i32
  }
  func.func @transform_5(%arg0: i32) -> (i32, i32) {
    %c0_i32 = arith.constant 0 : i32
    %c0_i32_0 = arith.constant 0 : i32
    return %arg0, %c0_i32 : i32, i32
  }
}

</mosaic_0001>

<llo_original>
// kernel: tpu_custom_call.1
$region0: #{tpu_custom_call.1}
  #allocation0 [shape = 'u32[]', space=smem, size = 0x4, offset = 0x4, fixed_abs, tag = 'smem constant byte address 0x4 - core index']
  #allocation1 [shape = 'u32[72,128]{1,0:T(1,128)}', space=vmem, size = 0x9000, scoped, tag = 'internal scratch']
  %s0 = inlined_call_operand.vmem [shape: f32[128,32], index: 0, kind: input, shape index: {}]
  %s1 = inlined_call_operand.vmem [shape: f32[32,128], index: 1, kind: input, shape index: {}]
  %s2 = inlined_call_operand.vmem [shape: f32[1,128], index: 2, kind: input, shape index: {}]
  %s3 = inlined_call_operand.vmem [shape: f32[128,32], index: 3, kind: input, shape index: {}]
  %s4 = inlined_call_operand.vmem [shape: f32[1,32], index: 4, kind: input, shape index: {}]
  %s5 = inlined_call_operand.vmem [shape: f32[128,32], index: 5, kind: output, shape index: {}]
  %s6 = sld [smem:[#allocation0]]
  $region30: #{tpu_custom_call.1} parent=0
    _
  %s8 = ssub.s32 1, %s6
  %s9 = scalar_select 0, %s8, %s6
  // Predicated region
  $region2: #{tpu_custom_call.1} parent=0 // pred_check
    _
  $region3: #{tpu_custom_call.1} parent=0 // pred_check_branch
    %11 = sbr.rel (0) target = $region5
  $region4: #{tpu_custom_call.1} parent=0 // pred_region
    _
  $region5: #{tpu_custom_call.1} parent=0 // pred_fallthru
    _
  // Predicated region
  $region6: #{tpu_custom_call.1} parent=0 // pred_check
    _
  $region7: #{tpu_custom_call.1} parent=0 // pred_check_branch
    %13 = sbr.rel (0) target = $region9
  $region8: #{tpu_custom_call.1} parent=0 // pred_region
    _
  $region9: #{tpu_custom_call.1} parent=0 // pred_fallthru
    _
  // Predicated region
  $region10: #{tpu_custom_call.1} parent=0 // pred_check
    _
  $region11: #{tpu_custom_call.1} parent=0 // pred_check_branch
    %15 = sbr.rel (0) target = $region13
  $region12: #{tpu_custom_call.1} parent=0 // pred_region
    _
  $region13: #{tpu_custom_call.1} parent=0 // pred_fallthru
    _
  // Predicated region
  $region14: #{tpu_custom_call.1} parent=0 // pred_check
    _
  $region15: #{tpu_custom_call.1} parent=0 // pred_check_branch
    %17 = sbr.rel (0) target = $region17
  $region16: #{tpu_custom_call.1} parent=0 // pred_region
    _
  $region17: #{tpu_custom_call.1} parent=0 // pred_fallthru
    _
  // Predicated region
  $region18: #{tpu_custom_call.1} parent=0 // pred_check
    _
  $region19: #{tpu_custom_call.1} parent=0 // pred_check_branch
    %19 = sbr.rel (0) target = $region21
  $region20: #{tpu_custom_call.1} parent=0 // pred_region
    _
  $region21: #{tpu_custom_call.1} parent=0 // pred_fallthru
    _
  %v20 = vld [vmem:[%s0] sm:$0xff]
  %v21 = vld [vmem:[%s0 + $0x8] sm:$0xff]
  %v22 = vld [vmem:[%s0 + $0x10] sm:$0xff]
  %v23 = vld [vmem:[%s0 + $0x18] sm:$0xff]
  %v24 = vld [vmem:[%s0 + $0x20] sm:$0xff]
  %v25 = vld [vmem:[%s0 + $0x28] sm:$0xff]
  %v26 = vld [vmem:[%s0 + $0x30] sm:$0xff]
  %v27 = vld [vmem:[%s0 + $0x38] sm:$0xff]
  %v28 = vld [vmem:[%s0 + $0x40] sm:$0xff]
  %v29 = vld [vmem:[%s0 + $0x48] sm:$0xff]
  %v30 = vld [vmem:[%s0 + $0x50] sm:$0xff]
  %v31 = vld [vmem:[%s0 + $0x58] sm:$0xff]
  %v32 = vld [vmem:[%s0 + $0x60] sm:$0xff]
  %v33 = vld [vmem:[%s0 + $0x68] sm:$0xff]
  %v34 = vld [vmem:[%s0 + $0x70] sm:$0xff]
  %v35 = vld [vmem:[%s0 + $0x78] sm:$0xff]
  %v36 = vld [vmem:[%s1] sm:$0xff]
  %v37 = vld [vmem:[%s1 + $0x8] sm:$0xff]
  %v38 = vld [vmem:[%s1 + $0x10] sm:$0xff]
  %v39 = vld [vmem:[%s1 + $0x18] sm:$0xff]
  %v40 = vld [vmem:[%s2] sm:$0x1]
  %v42 = vperm.slane %v40, 0
  %vm44 = vcmask 261120
  %v46 = vsel %vm44, %v20, 0
  %v49 = vsel %vm44, %v21, 0
  %v52 = vsel %vm44, %v22, 0
  %v55 = vsel %vm44, %v23, 0
  %v58 = vsel %vm44, %v24, 0
  %v61 = vsel %vm44, %v25, 0
  %v64 = vsel %vm44, %v26, 0
  %v67 = vsel %vm44, %v27, 0
  %v70 = vsel %vm44, %v28, 0
  %v73 = vsel %vm44, %v29, 0
  %v76 = vsel %vm44, %v30, 0
  %v79 = vsel %vm44, %v31, 0
  %v82 = vsel %vm44, %v32, 0
  %v85 = vsel %vm44, %v33, 0
  %v88 = vsel %vm44, %v34, 0
  %v91 = vsel %vm44, %v35, 0
  %93 = vmatpush.msra.mxu0 0.0
  %94 = vmatpush.msra.mxu0 0.0
  %95 = vmatpush.msra.mxu0 0.0
  %96 = vmatpush.msra.mxu0 0.0
  %97 = vmatpush.msra.mxu0 0.0
  %98 = vmatpush.msra.mxu0 0.0
  %99 = vmatpush.msra.mxu0 0.0
  %100 = vmatpush.msra.mxu0 0.0
  %101 = vmatpush.msra.mxu0 0.0
  %102 = vmatpush.msra.mxu0 0.0
  %103 = vmatpush.msra.mxu0 0.0
  %104 = vmatpush.msra.mxu0 0.0
  %105 = vmatpush.msra.mxu0 %v39
  %106 = vmatpush.msra.mxu0 %v38
  %107 = vmatpush.msra.mxu0 %v37
  %108 = vmatpush.msra.mxu0 %v36
  %109 = vmatmul.f32.gmra.mxu0 %v46
  %v110 = vpop.f32.mrf.mxu0
  %v111 = vadd.f32 %v42, %v110
  %112 = vmatmul.f32.gmra.mxu0 %v49
  %v113 = vpop.f32.mrf.mxu0
  %v114 = vadd.f32 %v42, %v113
  %115 = vmatmul.f32.gmra.mxu0 %v52
  %v116 = vpop.f32.mrf.mxu0
  %v117 = vadd.f32 %v42, %v116
  %118 = vmatmul.f32.gmra.mxu0 %v55
  %v119 = vpop.f32.mrf.mxu0
  %v120 = vadd.f32 %v42, %v119
  %121 = vmatmul.f32.gmra.mxu0 %v58
  %v122 = vpop.f32.mrf.mxu0
  %v123 = vadd.f32 %v42, %v122
  %124 = vmatmul.f32.gmra.mxu0 %v61
  %v125 = vpop.f32.mrf.mxu0
  %v126 = vadd.f32 %v42, %v125
  %127 = vmatmul.f32.gmra.mxu0 %v64
  %v128 = vpop.f32.mrf.mxu0
  %v129 = vadd.f32 %v42, %v128
  %130 = vmatmul.f32.gmra.mxu0 %v67
  %v131 = vpop.f32.mrf.mxu0
  %v132 = vadd.f32 %v42, %v131
  %133 = vmatmul.f32.gmra.mxu0 %v70
  %v134 = vpop.f32.mrf.mxu0
  %v135 = vadd.f32 %v42, %v134
  %136 = vmatmul.f32.gmra.mxu0 %v73
  %v137 = vpop.f32.mrf.mxu0
  %v138 = vadd.f32 %v42, %v137
  %139 = vmatmul.f32.gmra.mxu0 %v76
  %v140 = vpop.f32.mrf.mxu0
  %v141 = vadd.f32 %v42, %v140
  %142 = vmatmul.f32.gmra.mxu0 %v79
  %v143 = vpop.f32.mrf.mxu0
  %v144 = vadd.f32 %v42, %v143
  %145 = vmatmul.f32.gmra.mxu0 %v82
  %v146 = vpop.f32.mrf.mxu0
  %v147 = vadd.f32 %v42, %v146
  %148 = vmatmul.f32.gmra.mxu0 %v85
  %v149 = vpop.f32.mrf.mxu0
  %v150 = vadd.f32 %v42, %v149
  %151 = vmatmul.f32.gmra.mxu0 %v88
  %v152 = vpop.f32.mrf.mxu0
  %v153 = vadd.f32 %v42, %v152
  %154 = vmatmul.f32.gmra.mxu0 %v91
  %v155 = vpop.f32.mrf.mxu0
  %v156 = vadd.f32 %v42, %v155
  %157 = vdwg.mxu0
  %v158 = vmul.f32 %v111, 0.5
  %v159 = vmul.f32 %v114, 0.5
  %v160 = vmul.f32 %v117, 0.5
  %v161 = vmul.f32 %v120, 0.5
  %v162 = vmul.f32 %v123, 0.5
  %v163 = vmul.f32 %v126, 0.5
  %v164 = vmul.f32 %v129, 0.5
  %v165 = vmul.f32 %v132, 0.5
  %v166 = vmul.f32 %v135, 0.5
  %v167 = vmul.f32 %v138, 0.5
  %v168 = vmul.f32 %v141, 0.5
  %v169 = vmul.f32 %v144, 0.5
  %v170 = vmul.f32 %v147, 0.5
  %v171 = vmul.f32 %v150, 0.5
  %v172 = vmul.f32 %v153, 0.5
  %v173 = vmul.f32 %v156, 0.5
  %v174 = vmul.f32 %v111, 0.70710677
  %v175 = vmul.f32 %v114, 0.70710677
  %v176 = vmul.f32 %v117, 0.70710677
  %v177 = vmul.f32 %v120, 0.70710677
  %v178 = vmul.f32 %v123, 0.70710677
  %v179 = vmul.f32 %v126, 0.70710677
  %v180 = vmul.f32 %v129, 0.70710677
  %v181 = vmul.f32 %v132, 0.70710677
  %v182 = vmul.f32 %v135, 0.70710677
  %v183 = vmul.f32 %v138, 0.70710677
  %v184 = vmul.f32 %v141, 0.70710677
  %v185 = vmul.f32 %v144, 0.70710677
  %v186 = vmul.f32 %v147, 0.70710677
  %v187 = vmul.f32 %v150, 0.70710677
  %v188 = vmul.f32 %v153, 0.70710677
  %v189 = vmul.f32 %v156, 0.70710677
  %v190 = vand.u32 2147483647, %v174
  %v191 = vand.u32 2147483647, %v175
  %v192 = vand.u32 2147483647, %v176
  %v193 = vand.u32 2147483647, %v177
  %v194 = vand.u32 2147483647, %v178
  %v195 = vand.u32 2147483647, %v179
  %v196 = vand.u32 2147483647, %v180
  %v197 = vand.u32 2147483647, %v181
  %v198 = vand.u32 2147483647, %v182
  %v199 = vand.u32 2147483647, %v183
  %v200 = vand.u32 2147483647, %v184
  %v201 = vand.u32 2147483647, %v185
  %v202 = vand.u32 2147483647, %v186
  %v203 = vand.u32 2147483647, %v187
  %v204 = vand.u32 2147483647, %v188
  %v205 = vand.u32 2147483647, %v189
  %v206 = vmul.f32 %v190, 0.47047
  %v207 = vmul.f32 %v191, 0.47047
  %v208 = vmul.f32 %v192, 0.47047
  %v209 = vmul.f32 %v193, 0.47047
  %v210 = vmul.f32 %v194, 0.47047
  %v211 = vmul.f32 %v195, 0.47047
  %v212 = vmul.f32 %v196, 0.47047
  %v213 = vmul.f32 %v197, 0.47047
  %v214 = vmul.f32 %v198, 0.47047
  %v215 = vmul.f32 %v199, 0.47047
  %v216 = vmul.f32 %v200, 0.47047
  %v217 = vmul.f32 %v201, 0.47047
  %v218 = vmul.f32 %v202, 0.47047
  %v219 = vmul.f32 %v203, 0.47047
  %v220 = vmul.f32 %v204, 0.47047
  %v221 = vmul.f32 %v205, 0.47047
  %v222 = vadd.f32 %v206, 1.0
  %v223 = vadd.f32 %v207, 1.0
  %v224 = vadd.f32 %v208, 1.0
  %v225 = vadd.f32 %v209, 1.0
  %v226 = vadd.f32 %v210, 1.0
  %v227 = vadd.f32 %v211, 1.0
  %v228 = vadd.f32 %v212, 1.0
  %v229 = vadd.f32 %v213, 1.0
  %v230 = vadd.f32 %v214, 1.0
  %v231 = vadd.f32 %v215, 1.0
  %v232 = vadd.f32 %v216, 1.0
  %v233 = vadd.f32 %v217, 1.0
  %v234 = vadd.f32 %v218, 1.0
  %v235 = vadd.f32 %v219, 1.0
  %v236 = vadd.f32 %v220, 1.0
  %v237 = vadd.f32 %v221, 1.0
  %v238 = vrcp.pop %v222
  %v239 = vmul.f32 %v222, %v238
  %v240 = vsub.f32 1.0, %v239
  %v241 = vmul.f32 %v238, %v240
  %v242 = vadd.f32 %v238, %v241
  %vm243 = vweird.f32 %v222
  %vm244 = vweird.f32 %v238
  %vm245 = vmor %vm243, %vm244
  %v246 = vsel %vm245, %v238, %v242
  %v247 = vand.u32 2147483647, %v222
  %vm248 = vcmp.eq.f32.partialorder %v247, 8.507059e+37
  %v249 = vand.u32 %v222, 2147483648
  %v250 = vor.u32 1.1754944e-38, %v249
  %v251 = vsel %vm248, %v250, %v246
  %v252 = vrcp.pop %v223
  %v253 = vmul.f32 %v223, %v252
  %v254 = vsub.f32 1.0, %v253
  %v255 = vmul.f32 %v252, %v254
  %v256 = vadd.f32 %v252, %v255
  %vm257 = vweird.f32 %v223
  %vm258 = vweird.f32 %v252
  %vm259 = vmor %vm257, %vm258
  %v260 = vsel %vm259, %v252, %v256
  %v261 = vand.u32 2147483647, %v223
  %vm262 = vcmp.eq.f32.partialorder %v261, 8.507059e+37
  %v263 = vand.u32 %v223, 2147483648
  %v264 = vor.u32 1.1754944e-38, %v263
  %v265 = vsel %vm262, %v264, %v260
  %v266 = vrcp.pop %v224
  %v267 = vmul.f32 %v224, %v266
  %v268 = vsub.f32 1.0, %v267
  %v269 = vmul.f32 %v266, %v268
  %v270 = vadd.f32 %v266, %v269
  %vm271 = vweird.f32 %v224
  %vm272 = vweird.f32 %v266
  %vm273 = vmor %vm271, %vm272
  %v274 = vsel %vm273, %v266, %v270
  %v275 = vand.u32 2147483647, %v224
  %vm276 = vcmp.eq.f32.partialorder %v275, 8.507059e+37
  %v277 = vand.u32 %v224, 2147483648
  %v278 = vor.u32 1.1754944e-38, %v277
  %v279 = vsel %vm276, %v278, %v274
  %v280 = vrcp.pop %v225
  %v281 = vmul.f32 %v225, %v280
  %v282 = vsub.f32 1.0, %v281
  %v283 = vmul.f32 %v280, %v282
  %v284 = vadd.f32 %v280, %v283
  %vm285 = vweird.f32 %v225
  %vm286 = vweird.f32 %v280
  %vm287 = vmor %vm285, %vm286
  %v288 = vsel %vm287, %v280, %v284
  %v289 = vand.u32 2147483647, %v225
  %vm290 = vcmp.eq.f32.partialorder %v289, 8.507059e+37
  %v291 = vand.u32 %v225, 2147483648
  %v292 = vor.u32 1.1754944e-38, %v291
  %v293 = vsel %vm290, %v292, %v288
  %v294 = vrcp.pop %v226
  %v295 = vmul.f32 %v226, %v294
  %v296 = vsub.f32 1.0, %v295
  %v297 = vmul.f32 %v294, %v296
  %v298 = vadd.f32 %v294, %v297
  %vm299 = vweird.f32 %v226
  %vm300 = vweird.f32 %v294
  %vm301 = vmor %vm299, %vm300
  %v302 = vsel %vm301, %v294, %v298
  %v303 = vand.u32 2147483647, %v226
  %vm304 = vcmp.eq.f32.partialorder %v303, 8.507059e+37
  %v305 = vand.u32 %v226, 2147483648
  %v306 = vor.u32 1.1754944e-38, %v305
  %v307 = vsel %vm304, %v306, %v302
  %v308 = vrcp.pop %v227
  %v309 = vmul.f32 %v227, %v308
  %v310 = vsub.f32 1.0, %v309
  %v311 = vmul.f32 %v308, %v310
  %v312 = vadd.f32 %v308, %v311
  %vm313 = vweird.f32 %v227
  %vm314 = vweird.f32 %v308
  %vm315 = vmor %vm313, %vm314
  %v316 = vsel %vm315, %v308, %v312
  %v317 = vand.u32 2147483647, %v227
  %vm318 = vcmp.eq.f32.partialorder %v317, 8.507059e+37
  %v319 = vand.u32 %v227, 2147483648
  %v320 = vor.u32 1.1754944e-38, %v319
  %v321 = vsel %vm318, %v320, %v316
  %v322 = vrcp.pop %v228
  %v323 = vmul.f32 %v228, %v322
  %v324 = vsub.f32 1.0, %v323
  %v325 = vmul.f32 %v322, %v324
  %v326 = vadd.f32 %v322, %v325
  %vm327 = vweird.f32 %v228
  %vm328 = vweird.f32 %v322
  %vm329 = vmor %vm327, %vm328
  %v330 = vsel %vm329, %v322, %v326
  %v331 = vand.u32 2147483647, %v228
  %vm332 = vcmp.eq.f32.partialorder %v331, 8.507059e+37
  %v333 = vand.u32 %v228, 2147483648
  %v334 = vor.u32 1.1754944e-38, %v333
  %v335 = vsel %vm332, %v334, %v330
  %v336 = vrcp.pop %v229
  %v337 = vmul.f32 %v229, %v336
  %v338 = vsub.f32 1.0, %v337
  %v339 = vmul.f32 %v336, %v338
  %v340 = vadd.f32 %v336, %v339
  %vm341 = vweird.f32 %v229
  %vm342 = vweird.f32 %v336
  %vm343 = vmor %vm341, %vm342
  %v344 = vsel %vm343, %v336, %v340
  %v345 = vand.u32 2147483647, %v229
  %vm346 = vcmp.eq.f32.partialorder %v345, 8.507059e+37
  %v347 = vand.u32 %v229, 2147483648
  %v348 = vor.u32 1.1754944e-38, %v347
  %v349 = vsel %vm346, %v348, %v344
  %v350 = vrcp.pop %v230
  %v351 = vmul.f32 %v230, %v350
  %v352 = vsub.f32 1.0, %v351
  %v353 = vmul.f32 %v350, %v352
  %v354 = vadd.f32 %v350, %v353
  %vm355 = vweird.f32 %v230
  %vm356 = vweird.f32 %v350
  %vm357 = vmor %vm355, %vm356
  %v358 = vsel %vm357, %v350, %v354
  %v359 = vand.u32 2147483647, %v230
  %vm360 = vcmp.eq.f32.partialorder %v359, 8.507059e+37
  %v361 = vand.u32 %v230, 2147483648
  %v362 = vor.u32 1.1754944e-38, %v361
  %v363 = vsel %vm360, %v362, %v358
  %v364 = vrcp.pop %v231
  %v365 = vmul.f32 %v231, %v364
  %v366 = vsub.f32 1.0, %v365
  %v367 = vmul.f32 %v364, %v366
  %v368 = vadd.f32 %v364, %v367
  %vm369 = vweird.f32 %v231
  %vm370 = vweird.f32 %v364
  %vm371 = vmor %vm369, %vm370
  %v372 = vsel %vm371, %v364, %v368
  %v373 = vand.u32 2147483647, %v231
  %vm374 = vcmp.eq.f32.partialorder %v373, 8.507059e+37
  %v375 = vand.u32 %v231, 2147483648
  %v376 = vor.u32 1.1754944e-38, %v375
  %v377 = vsel %vm374, %v376, %v372
  %v378 = vrcp.pop %v232
  %v379 = vmul.f32 %v232, %v378
  %v380 = vsub.f32 1.0, %v379
  %v381 = vmul.f32 %v378, %v380
  %v382 = vadd.f32 %v378, %v381
  %vm383 = vweird.f32 %v232
  %vm384 = vweird.f32 %v378
  %vm385 = vmor %vm383, %vm384
  %v386 = vsel %vm385, %v378, %v382
  %v387 = vand.u32 2147483647, %v232
  %vm388 = vcmp.eq.f32.partialorder %v387, 8.507059e+37
  %v389 = vand.u32 %v232, 2147483648
  %v390 = vor.u32 1.1754944e-38, %v389
  %v391 = vsel %vm388, %v390, %v386
  %v392 = vrcp.pop %v233
  %v393 = vmul.f32 %v233, %v392
  %v394 = vsub.f32 1.0, %v393
  %v395 = vmul.f32 %v392, %v394
  %v396 = vadd.f32 %v392, %v395
  %vm397 = vweird.f32 %v233
  %vm398 = vweird.f32 %v392
  %vm399 = vmor %vm397, %vm398
  %v400 = vsel %vm399, %v392, %v396
  %v401 = vand.u32 2147483647, %v233
  %vm402 = vcmp.eq.f32.partialorder %v401, 8.507059e+37
  %v403 = vand.u32 %v233, 2147483648
  %v404 = vor.u32 1.1754944e-38, %v403
  %v405 = vsel %vm402, %v404, %v400
  %v406 = vrcp.pop %v234
  %v407 = vmul.f32 %v234, %v406
  %v408 = vsub.f32 1.0, %v407
  %v409 = vmul.f32 %v406, %v408
  %v410 = vadd.f32 %v406, %v409
  %vm411 = vweird.f32 %v234
  %vm412 = vweird.f32 %v406
  %vm413 = vmor %vm411, %vm412
  %v414 = vsel %vm413, %v406, %v410
  %v415 = vand.u32 2147483647, %v234
  %vm416 = vcmp.eq.f32.partialorder %v415, 8.507059e+37
  %v417 = vand.u32 %v234, 2147483648
  %v418 = vor.u32 1.1754944e-38, %v417
  %v419 = vsel %vm416, %v418, %v414
  %v420 = vrcp.pop %v235
  %v421 = vmul.f32 %v235, %v420
  %v422 = vsub.f32 1.0, %v421
  %v423 = vmul.f32 %v420, %v422
  %v424 = vadd.f32 %v420, %v423
  %vm425 = vweird.f32 %v235
  %vm426 = vweird.f32 %v420
  %vm427 = vmor %vm425, %vm426
  %v428 = vsel %vm427, %v420, %v424
  %v429 = vand.u32 2147483647, %v235
  %vm430 = vcmp.eq.f32.partialorder %v429, 8.507059e+37
  %v431 = vand.u32 %v235, 2147483648
  %v432 = vor.u32 1.1754944e-38, %v431
  %v433 = vsel %vm430, %v432, %v428
  %v434 = vrcp.pop %v236
  %v435 = vmul.f32 %v236, %v434
  %v436 = vsub.f32 1.0, %v435
  %v437 = vmul.f32 %v434, %v436
  %v438 = vadd.f32 %v434, %v437
  %vm439 = vweird.f32 %v236
  %vm440 = vweird.f32 %v434
  %vm441 = vmor %vm439, %vm440
  %v442 = vsel %vm441, %v434, %v438
  %v443 = vand.u32 2147483647, %v236
  %vm444 = vcmp.eq.f32.partialorder %v443, 8.507059e+37
  %v445 = vand.u32 %v236, 2147483648
  %v446 = vor.u32 1.1754944e-38, %v445
  %v447 = vsel %vm444, %v446, %v442
  %v448 = vrcp.pop %v237
  %v449 = vmul.f32 %v237, %v448
  %v450 = vsub.f32 1.0, %v449
  %v451 = vmul.f32 %v448, %v450
  %v452 = vadd.f32 %v448, %v451
  %vm453 = vweird.f32 %v237
  %vm454 = vweird.f32 %v448
  %vm455 = vmor %vm453, %vm454
  %v456 = vsel %vm455, %v448, %v452
  %v457 = vand.u32 2147483647, %v237
  %vm458 = vcmp.eq.f32.partialorder %v457, 8.507059e+37
  %v459 = vand.u32 %v237, 2147483648
  %v460 = vor.u32 1.1754944e-38, %v459
  %v461 = vsel %vm458, %v460, %v456
  %v462 = vmul.f32 %v251, 0.7478556
  %v463 = vmul.f32 %v265, 0.7478556
  %v464 = vmul.f32 %v279, 0.7478556
  %v465 = vmul.f32 %v293, 0.7478556
  %v466 = vmul.f32 %v307, 0.7478556
  %v467 = vmul.f32 %v321, 0.7478556
  %v468 = vmul.f32 %v335, 0.7478556
  %v469 = vmul.f32 %v349, 0.7478556
  %v470 = vmul.f32 %v363, 0.7478556
  %v471 = vmul.f32 %v377, 0.7478556
  %v472 = vmul.f32 %v391, 0.7478556
  %v473 = vmul.f32 %v405, 0.7478556
  %v474 = vmul.f32 %v419, 0.7478556
  %v475 = vmul.f32 %v433, 0.7478556
  %v476 = vmul.f32 %v447, 0.7478556
  %v477 = vmul.f32 %v461, 0.7478556
  %v478 = vadd.f32 %v462, -0.0958798
  %v479 = vadd.f32 %v463, -0.0958798
  %v480 = vadd.f32 %v464, -0.0958798
  %v481 = vadd.f32 %v465, -0.0958798
  %v482 = vadd.f32 %v466, -0.0958798
  %v483 = vadd.f32 %v467, -0.0958798
  %v484 = vadd.f32 %v468, -0.0958798
  %v485 = vadd.f32 %v469, -0.0958798
  %v486 = vadd.f32 %v470, -0.0958798
  %v487 = vadd.f32 %v471, -0.0958798
  %v488 = vadd.f32 %v472, -0.0958798
  %v489 = vadd.f32 %v473, -0.0958798
  %v490 = vadd.f32 %v474, -0.0958798
  %v491 = vadd.f32 %v475, -0.0958798
  %v492 = vadd.f32 %v476, -0.0958798
  %v493 = vadd.f32 %v477, -0.0958798
  %v494 = vmul.f32 %v478, %v251
  %v495 = vmul.f32 %v479, %v265
  %v496 = vmul.f32 %v480, %v279
  %v497 = vmul.f32 %v481, %v293
  %v498 = vmul.f32 %v482, %v307
  %v499 = vmul.f32 %v483, %v321
  %v500 = vmul.f32 %v484, %v335
  %v501 = vmul.f32 %v485, %v349
  %v502 = vmul.f32 %v486, %v363
  %v503 = vmul.f32 %v487, %v377
  %v504 = vmul.f32 %v488, %v391
  %v505 = vmul.f32 %v489, %v405
  %v506 = vmul.f32 %v490, %v419
  %v507 = vmul.f32 %v491, %v433
  %v508 = vmul.f32 %v492, %v447
  %v509 = vmul.f32 %v493, %v461
  %v510 = vadd.f32 %v494, 0.3480242
  %v511 = vadd.f32 %v495, 0.3480242
  %v512 = vadd.f32 %v496, 0.3480242
  %v513 = vadd.f32 %v497, 0.3480242
  %v514 = vadd.f32 %v498, 0.3480242
  %v515 = vadd.f32 %v499, 0.3480242
  %v516 = vadd.f32 %v500, 0.3480242
  %v517 = vadd.f32 %v501, 0.3480242
  %v518 = vadd.f32 %v502, 0.3480242
  %v519 = vadd.f32 %v503, 0.3480242
  %v520 = vadd.f32 %v504, 0.3480242
  %v521 = vadd.f32 %v505, 0.3480242
  %v522 = vadd.f32 %v506, 0.3480242
  %v523 = vadd.f32 %v507, 0.3480242
  %v524 = vadd.f32 %v508, 0.3480242
  %v525 = vadd.f32 %v509, 0.3480242
  %v526 = vmul.f32 %v510, %v251
  %v527 = vmul.f32 %v511, %v265
  %v528 = vmul.f32 %v512, %v279
  %v529 = vmul.f32 %v513, %v293
  %v530 = vmul.f32 %v514, %v307
  %v531 = vmul.f32 %v515, %v321
  %v532 = vmul.f32 %v516, %v335
  %v533 = vmul.f32 %v517, %v349
  %v534 = vmul.f32 %v518, %v363
  %v535 = vmul.f32 %v519, %v377
  %v536 = vmul.f32 %v520, %v391
  %v537 = vmul.f32 %v521, %v405
  %v538 = vmul.f32 %v522, %v419
  %v539 = vmul.f32 %v523, %v433
  %v540 = vmul.f32 %v524, %v447
  %v541 = vmul.f32 %v525, %v461
  %v542 = vmul.f32 %v190, %v190
  %v543 = vmul.f32 %v191, %v191
  %v544 = vmul.f32 %v192, %v192
  %v545 = vmul.f32 %v193, %v193
  %v546 = vmul.f32 %v194, %v194
  %v547 = vmul.f32 %v195, %v195
  %v548 = vmul.f32 %v196, %v196
  %v549 = vmul.f32 %v197, %v197
  %v550 = vmul.f32 %v198, %v198
  %v551 = vmul.f32 %v199, %v199
  %v552 = vmul.f32 %v200, %v200
  %v553 = vmul.f32 %v201, %v201
  %v554 = vmul.f32 %v202, %v202
  %v555 = vmul.f32 %v203, %v203
  %v556 = vmul.f32 %v204, %v204
  %v557 = vmul.f32 %v205, %v205
  %v558 = vsub.f32 0.0, %v542
  %v559 = vsub.f32 0.0, %v543
  %v560 = vsub.f32 0.0, %v544
  %v561 = vsub.f32 0.0, %v545
  %v562 = vsub.f32 0.0, %v546
  %v563 = vsub.f32 0.0, %v547
  %v564 = vsub.f32 0.0, %v548
  %v565 = vsub.f32 0.0, %v549
  %v566 = vsub.f32 0.0, %v550
  %v567 = vsub.f32 0.0, %v551
  %v568 = vsub.f32 0.0, %v552
  %v569 = vsub.f32 0.0, %v553
  %v570 = vsub.f32 0.0, %v554
  %v571 = vsub.f32 0.0, %v555
  %v572 = vsub.f32 0.0, %v556
  %v573 = vsub.f32 0.0, %v557
  %v574 = vmul.f32 %v558, 1.442695
  %v575 = vpow.pop %v574
  %v576 = vmul.f32 %v559, 1.442695
  %v577 = vpow.pop %v576
  %v578 = vmul.f32 %v560, 1.442695
  %v579 = vpow.pop %v578
  %v580 = vmul.f32 %v561, 1.442695
  %v581 = vpow.pop %v580
  %v582 = vmul.f32 %v562, 1.442695
  %v583 = vpow.pop %v582
  %v584 = vmul.f32 %v563, 1.442695
  %v585 = vpow.pop %v584
  %v586 = vmul.f32 %v564, 1.442695
  %v587 = vpow.pop %v586
  %v588 = vmul.f32 %v565, 1.442695
  %v589 = vpow.pop %v588
  %v590 = vmul.f32 %v566, 1.442695
  %v591 = vpow.pop %v590
  %v592 = vmul.f32 %v567, 1.442695
  %v593 = vpow.pop %v592
  %v594 = vmul.f32 %v568, 1.442695
  %v595 = vpow.pop %v594
  %v596 = vmul.f32 %v569, 1.442695
  %v597 = vpow.pop %v596
  %v598 = vmul.f32 %v570, 1.442695
  %v599 = vpow.pop %v598
  %v600 = vmul.f32 %v571, 1.442695
  %v601 = vpow.pop %v600
  %v602 = vmul.f32 %v572, 1.442695
  %v603 = vpow.pop %v602
  %v604 = vmul.f32 %v573, 1.442695
  %v605 = vpow.pop %v604
  %v606 = vmul.f32 %v526, %v575
  %v607 = vmul.f32 %v527, %v577
  %v608 = vmul.f32 %v528, %v579
  %v609 = vmul.f32 %v529, %v581
  %v610 = vmul.f32 %v530, %v583
  %v611 = vmul.f32 %v531, %v585
  %v612 = vmul.f32 %v532, %v587
  %v613 = vmul.f32 %v533, %v589
  %v614 = vmul.f32 %v534, %v591
  %v615 = vmul.f32 %v535, %v593
  %v616 = vmul.f32 %v536, %v595
  %v617 = vmul.f32 %v537, %v597
  %v618 = vmul.f32 %v538, %v599
  %v619 = vmul.f32 %v539, %v601
  %v620 = vmul.f32 %v540, %v603
  %v621 = vmul.f32 %v541, %v605
  %v622 = vsub.f32 1.0, %v606
  %v623 = vsub.f32 1.0, %v607
  %v624 = vsub.f32 1.0, %v608
  %v625 = vsub.f32 1.0, %v609
  %v626 = vsub.f32 1.0, %v610
  %v627 = vsub.f32 1.0, %v611
  %v628 = vsub.f32 1.0, %v612
  %v629 = vsub.f32 1.0, %v613
  %v630 = vsub.f32 1.0, %v614
  %v631 = vsub.f32 1.0, %v615
  %v632 = vsub.f32 1.0, %v616
  %v633 = vsub.f32 1.0, %v617
  %v634 = vsub.f32 1.0, %v618
  %v635 = vsub.f32 1.0, %v619
  %v636 = vsub.f32 1.0, %v620
  %v637 = vsub.f32 1.0, %v621
  %vm638 = vcmp.ge.f32.partialorder %v174, 0.0
  %vm639 = vcmp.ge.f32.partialorder %v175, 0.0
  %vm640 = vcmp.ge.f32.partialorder %v176, 0.0
  %vm641 = vcmp.ge.f32.partialorder %v177, 0.0
  %vm642 = vcmp.ge.f32.partialorder %v178, 0.0
  %vm643 = vcmp.ge.f32.partialorder %v179, 0.0
  %vm644 = vcmp.ge.f32.partialorder %v180, 0.0
  %vm645 = vcmp.ge.f32.partialorder %v181, 0.0
  %vm646 = vcmp.ge.f32.partialorder %v182, 0.0
  %vm647 = vcmp.ge.f32.partialorder %v183, 0.0
  %vm648 = vcmp.ge.f32.partialorder %v184, 0.0
  %vm649 = vcmp.ge.f32.partialorder %v185, 0.0
  %vm650 = vcmp.ge.f32.partialorder %v186, 0.0
  %vm651 = vcmp.ge.f32.partialorder %v187, 0.0
  %vm652 = vcmp.ge.f32.partialorder %v188, 0.0
  %vm653 = vcmp.ge.f32.partialorder %v189, 0.0
  %v654 = vsub.f32 0.0, %v622
  %v655 = vsub.f32 0.0, %v623
  %v656 = vsub.f32 0.0, %v624
  %v657 = vsub.f32 0.0, %v625
  %v658 = vsub.f32 0.0, %v626
  %v659 = vsub.f32 0.0, %v627
  %v660 = vsub.f32 0.0, %v628
  %v661 = vsub.f32 0.0, %v629
  %v662 = vsub.f32 0.0, %v630
  %v663 = vsub.f32 0.0, %v631
  %v664 = vsub.f32 0.0, %v632
  %v665 = vsub.f32 0.0, %v633
  %v666 = vsub.f32 0.0, %v634
  %v667 = vsub.f32 0.0, %v635
  %v668 = vsub.f32 0.0, %v636
  %v669 = vsub.f32 0.0, %v637
  %v670 = vsel %vm638, %v622, %v654
  %v671 = vsel %vm639, %v623, %v655
  %v672 = vsel %vm640, %v624, %v656
  %v673 = vsel %vm641, %v625, %v657
  %v674 = vsel %vm642, %v626, %v658
  %v675 = vsel %vm643, %v627, %v659
  %v676 = vsel %vm644, %v628, %v660
  %v677 = vsel %vm645, %v629, %v661
  %v678 = vsel %vm646, %v630, %v662
  %v679 = vsel %vm647, %v631, %v663
  %v680 = vsel %vm648, %v632, %v664
  %v681 = vsel %vm649, %v633, %v665
  %v682 = vsel %vm650, %v634, %v666
  %v683 = vsel %vm651, %v635, %v667
  %v684 = vsel %vm652, %v636, %v668
  %v685 = vsel %vm653, %v637, %v669
  %v686 = vadd.f32 %v670, 1.0
  %v687 = vadd.f32 %v671, 1.0
  %v688 = vadd.f32 %v672, 1.0
  %v689 = vadd.f32 %v673, 1.0
  %v690 = vadd.f32 %v674, 1.0
  %v691 = vadd.f32 %v675, 1.0
  %v692 = vadd.f32 %v676, 1.0
  %v693 = vadd.f32 %v677, 1.0
  %v694 = vadd.f32 %v678, 1.0
  %v695 = vadd.f32 %v679, 1.0
  %v696 = vadd.f32 %v680, 1.0
  %v697 = vadd.f32 %v681, 1.0
  %v698 = vadd.f32 %v682, 1.0
  %v699 = vadd.f32 %v683, 1.0
  %v700 = vadd.f32 %v684, 1.0
  %v701 = vadd.f32 %v685, 1.0
  %v702 = vmul.f32 %v158, %v686
  %v703 = vmul.f32 %v159, %v687
  %v704 = vmul.f32 %v160, %v688
  %v705 = vmul.f32 %v161, %v689
  %v706 = vmul.f32 %v162, %v690
  %v707 = vmul.f32 %v163, %v691
  %v708 = vmul.f32 %v164, %v692
  %v709 = vmul.f32 %v165, %v693
  %v710 = vmul.f32 %v166, %v694
  %v711 = vmul.f32 %v167, %v695
  %v712 = vmul.f32 %v168, %v696
  %v713 = vmul.f32 %v169, %v697
  %v714 = vmul.f32 %v170, %v698
  %v715 = vmul.f32 %v171, %v699
  %v716 = vmul.f32 %v172, %v700
  %v717 = vmul.f32 %v173, %v701
  %v718 = vld [vmem:[%s3] sm:$0xff]
  %v719 = vld [vmem:[%s3 + $0x8] sm:$0xff]
  %v720 = vld [vmem:[%s3 + $0x10] sm:$0xff]
  %v721 = vld [vmem:[%s3 + $0x18] sm:$0xff]
  %v722 = vld [vmem:[%s3 + $0x20] sm:$0xff]
  %v723 = vld [vmem:[%s3 + $0x28] sm:$0xff]
  %v724 = vld [vmem:[%s3 + $0x30] sm:$0xff]
  %v725 = vld [vmem:[%s3 + $0x38] sm:$0xff]
  %v726 = vld [vmem:[%s3 + $0x40] sm:$0xff]
  %v727 = vld [vmem:[%s3 + $0x48] sm:$0xff]
  %v728 = vld [vmem:[%s3 + $0x50] sm:$0xff]
  %v729 = vld [vmem:[%s3 + $0x58] sm:$0xff]
  %v730 = vld [vmem:[%s3 + $0x60] sm:$0xff]
  %v731 = vld [vmem:[%s3 + $0x68] sm:$0xff]
  %v732 = vld [vmem:[%s3 + $0x70] sm:$0xff]
  %v733 = vld [vmem:[%s3 + $0x78] sm:$0xff]
  %v734 = vld [vmem:[%s4] sm:$0x1]
  %v736 = vperm.slane %v734, 0
  %738 = vmatpush.msra.mxu0 %v733
  %739 = vmatpush.msra.mxu0 %v732
  %740 = vmatpush.msra.mxu0 %v731
  %741 = vmatpush.msra.mxu0 %v730
  %742 = vmatpush.msra.mxu0 %v729
  %743 = vmatpush.msra.mxu0 %v728
  %744 = vmatpush.msra.mxu0 %v727
  %745 = vmatpush.msra.mxu0 %v726
  %746 = vmatpush.msra.mxu0 %v725
  %747 = vmatpush.msra.mxu0 %v724
  %748 = vmatpush.msra.mxu0 %v723
  %749 = vmatpush.msra.mxu0 %v722
  %750 = vmatpush.msra.mxu0 %v721
  %751 = vmatpush.msra.mxu0 %v720
  %752 = vmatpush.msra.mxu0 %v719
  %753 = vmatpush.msra.mxu0 %v718
  %754 = vmatmul.f32.gmra.mxu0 %v702
  %v755 = vpop.f32.mrf.mxu0
  %v756 = vadd.f32 %v736, %v755
  %757 = vmatmul.f32.gmra.mxu0 %v703
  %v758 = vpop.f32.mrf.mxu0
  %v759 = vadd.f32 %v736, %v758
  %760 = vmatmul.f32.gmra.mxu0 %v704
  %v761 = vpop.f32.mrf.mxu0
  %v762 = vadd.f32 %v736, %v761
  %763 = vmatmul.f32.gmra.mxu0 %v705
  %v764 = vpop.f32.mrf.mxu0
  %v765 = vadd.f32 %v736, %v764
  %766 = vmatmul.f32.gmra.mxu0 %v706
  %v767 = vpop.f32.mrf.mxu0
  %v768 = vadd.f32 %v736, %v767
  %769 = vmatmul.f32.gmra.mxu0 %v707
  %v770 = vpop.f32.mrf.mxu0
  %v771 = vadd.f32 %v736, %v770
  %772 = vmatmul.f32.gmra.mxu0 %v708
  %v773 = vpop.f32.mrf.mxu0
  %v774 = vadd.f32 %v736, %v773
  %775 = vmatmul.f32.gmra.mxu0 %v709
  %v776 = vpop.f32.mrf.mxu0
  %v777 = vadd.f32 %v736, %v776
  %778 = vmatmul.f32.gmra.mxu0 %v710
  %v779 = vpop.f32.mrf.mxu0
  %v780 = vadd.f32 %v736, %v779
  %781 = vmatmul.f32.gmra.mxu0 %v711
  %v782 = vpop.f32.mrf.mxu0
  %v783 = vadd.f32 %v736, %v782
  %784 = vmatmul.f32.gmra.mxu0 %v712
  %v785 = vpop.f32.mrf.mxu0
  %v786 = vadd.f32 %v736, %v785
  %787 = vmatmul.f32.gmra.mxu0 %v713
  %v788 = vpop.f32.mrf.mxu0
  %v789 = vadd.f32 %v736, %v788
  %790 = vmatmul.f32.gmra.mxu0 %v714
  %v791 = vpop.f32.mrf.mxu0
  %v792 = vadd.f32 %v736, %v791
  %793 = vmatmul.f32.gmra.mxu0 %v715
  %v794 = vpop.f32.mrf.mxu0
  %v795 = vadd.f32 %v736, %v794
  %796 = vmatmul.f32.gmra.mxu0 %v716
  %v797 = vpop.f32.mrf.mxu0
  %v798 = vadd.f32 %v736, %v797
  %799 = vmatmul.f32.gmra.mxu0 %v717
  %v800 = vpop.f32.mrf.mxu0
  %v801 = vadd.f32 %v736, %v800
  %802 = vdwg.mxu0
  %803 = vst.msk [vmem:[%s5] sm:$0xff] %vm44, %v756
  %804 = vst.msk [vmem:[%s5 + $0x8] sm:$0xff] %vm44, %v759
  %805 = vst.msk [vmem:[%s5 + $0x10] sm:$0xff] %vm44, %v762
  %806 = vst.msk [vmem:[%s5 + $0x18] sm:$0xff] %vm44, %v765
  %807 = vst.msk [vmem:[%s5 + $0x20] sm:$0xff] %vm44, %v768
  %808 = vst.msk [vmem:[%s5 + $0x28] sm:$0xff] %vm44, %v771
  %809 = vst.msk [vmem:[%s5 + $0x30] sm:$0xff] %vm44, %v774
  %810 = vst.msk [vmem:[%s5 + $0x38] sm:$0xff] %vm44, %v777
  %811 = vst.msk [vmem:[%s5 + $0x40] sm:$0xff] %vm44, %v780
  %812 = vst.msk [vmem:[%s5 + $0x48] sm:$0xff] %vm44, %v783
  %813 = vst.msk [vmem:[%s5 + $0x50] sm:$0xff] %vm44, %v786
  %814 = vst.msk [vmem:[%s5 + $0x58] sm:$0xff] %vm44, %v789
  %815 = vst.msk [vmem:[%s5 + $0x60] sm:$0xff] %vm44, %v792
  %816 = vst.msk [vmem:[%s5 + $0x68] sm:$0xff] %vm44, %v795
  %817 = vst.msk [vmem:[%s5 + $0x70] sm:$0xff] %vm44, %v798
  %818 = vst.msk [vmem:[%s5 + $0x78] sm:$0xff] %vm44, %v801
  // Predicated region
  $region22: #{tpu_custom_call.1} parent=0 // pred_check
    _
  $region23: #{tpu_custom_call.1} parent=0 // pred_check_branch
    %820 = sbr.rel (0) target = $region25
  $region24: #{tpu_custom_call.1} parent=0 // pred_region
    _
  $region25: #{tpu_custom_call.1} parent=0 // pred_fallthru
    _
  // Predicated region
  $region26: #{tpu_custom_call.1} parent=0 // pred_check
    _
  $region27: #{tpu_custom_call.1} parent=0 // pred_check_branch
    %822 = sbr.rel (0) target = $region29
  $region28: #{tpu_custom_call.1} parent=0 // pred_region
    _
  $region29: #{tpu_custom_call.1} parent=0 // pred_fallthru
    _

</llo_original>
